<compile_context>
chip_gen: v6e
topology: v6e:2x2x1
jax: 0.10.0
libtpu: 0.0.40
codegen_flags: <defaults>
</compile_context>

<pallas_src>
import functools

import jax
import jax.numpy as jnp
from jax.experimental import pallas as pl
from jax.experimental.pallas import tpu as pltpu


_VMEM_LIMIT = 48 * 1024 * 1024  # safe on v5e/v6e (128 MiB) and v7x (64 MiB)


# ---------------------------------------------------------------------------
# Tile-size helpers
# ---------------------------------------------------------------------------
def _round_up(x, m):
    return (x + m - 1) // m * m


def _pick_tile_h(H, Wk, cin3, cout, budget=24 * 1024 * 1024):
    """Largest row-tile TH dividing H whose per-step working set fits budget."""
    for th in range(H, 0, -1):
        if H % th:
            continue
        in_b = 2 * (th + 2) * Wk * cin3 * 2       # double-buffered bf16 input tile
        out_b = 2 * th * Wk * cout * 2            # double-buffered bf16 output tile
        acc_b = 2 * th * Wk * cout * 4            # f32 accumulator + dot temp
        w_b = 3 * cin3 * cout * 2                 # resident packed weights
        if in_b + out_b + acc_b + w_b <= budget:
            return th
    return 1


def _pick_rows(R, C, budget=2 * 1024 * 1024):
    """Largest power-of-two row chunk dividing R under a byte budget."""
    tr = 1
    while (tr * 2 <= R and R % (tr * 2) == 0
           and (tr * 2) * C * 4 <= budget):
        tr *= 2
    if tr % 8 != 0 and tr != R:
        tr = R  # fall back to one full block (keeps the (8,128) rule happy)
    return tr


def _pick_gram_tile(L, C, budget=16 * 1024 * 1024):
    """Largest multiple-of-128 divisor of L under budget, else the full L."""
    best = None
    tl = 128
    while tl <= L:
        if L % tl == 0 and 8 * C * tl + 4 * C * C <= budget:
            best = tl
        tl += 128
    return best if best is not None else L


# ---------------------------------------------------------------------------
# 3x3 conv + bias + ReLU
#   row-tiled; dx taps pre-packed into channels => 3 MXU matmuls of K = 3*Cin
# ---------------------------------------------------------------------------
def _conv3x3_kernel(x_ref, w_ref, b_ref, o_ref, *, relu):
    """x_ref: (1, 1, TH+2, Wk, 3*Cin) bf16 row tile (2-row halo, dx-packed)
       w_ref: (3, 3*Cin, Cout)        bf16 packed weights (dy, dx*Cin+cin)
       b_ref: (1, Cout)               f32 bias
       o_ref: (1, TH, Wk, Cout)       bf16 output row tile
    """
    th = o_ref.shape[1]
    wk = o_ref.shape[2]
    cout = o_ref.shape[3]
    k = w_ref.shape[1]                              # 3*Cin

    xt = x_ref[0, 0]                                # (TH+2, Wk, 3*Cin)

    acc = None
    for dy in range(3):                             # cheap leading-axis slices
        patch = xt[dy:dy + th].reshape(th * wk, k)  # Wk % 8 == 0 -> trivial
        part = jnp.dot(patch, w_ref[dy],            # bf16 x bf16 -> f32 on MXU
                       preferred_element_type=jnp.float32)
        acc = part if acc is None else acc + part

    acc = acc + b_ref[...]                          # f32 bias
    if relu:
        acc = jnp.maximum(acc, 0.0)
    o_ref[0] = acc.reshape(th, wk, cout).astype(o_ref.dtype)


def conv3x3(x, w, b, *, relu=True):
    """x: (N,H,W,Cin) NHWC; w: (3,3,Cin,Cout) HWIO; b: (Cout,). stride=1, pad=1."""
    N, H, W, Cin = x.shape
    Cout = w.shape[3]
    Wk = _round_up(W, 8)                  # kernel working width (lane-friendly)
    K = 3 * Cin

    # zero pad: 1 row halo top/bottom, 1 col halo left, extend right so that
    # Wk output columns (some garbage) can be computed and later sliced off.
    right_pad = (Wk + 2) - (W + 1)
    xp = jnp.pad(x.astype(jnp.bfloat16), ((0, 0), (1, 1), (1, right_pad), (0, 0)))

    # pack the 3 dx (column) taps into the channel axis: (N, H+2, Wk, 3*Cin)
    xpk = jnp.concatenate([xp[:, :, 0:Wk, :],
                           xp[:, :, 1:Wk + 1, :],
                           xp[:, :, 2:Wk + 2, :]], axis=-1)

    th = _pick_tile_h(H, Wk, K, Cout)
    nT = H // th
    if nT == 1:
        xt = xpk[:, None]                                    # (N,1,H+2,Wk,3Cin)
    else:
        # pre-split into overlapping row tiles with a 2-row halo
        rows = jnp.arange(nT)[:, None] * th + jnp.arange(th + 2)[None, :]
        xt = xpk[:, rows]                                    # (N,nT,TH+2,Wk,3Cin)

    # weights: (3,3,Cin,Cout) -> (dy, dx*Cin+cin, Cout)
    wk_ = w.reshape(3, K, Cout).astype(jnp.bfloat16)
    b2 = b.reshape(1, Cout).astype(jnp.float32)

    kernel = functools.partial(_conv3x3_kernel, relu=relu)
    out = pl.pallas_call(
        kernel,
        out_shape=jax.ShapeDtypeStruct((N, H, Wk, Cout), jnp.bfloat16),
        grid=(N, nT),
        in_specs=[
            pl.BlockSpec((1, 1, th + 2, Wk, K), lambda n, t: (n, t, 0, 0, 0)),
            pl.BlockSpec((3, K, Cout), lambda n, t: (0, 0, 0)),   # resident
            pl.BlockSpec((1, Cout), lambda n, t: (0, 0)),         # resident
        ],
        out_specs=pl.BlockSpec((1, th, Wk, Cout), lambda n, t: (n, t, 0, 0)),
        compiler_params=pltpu.CompilerParams(
            dimension_semantics=("parallel", "parallel"),
            vmem_limit_bytes=_VMEM_LIMIT),
    )(xt, wk_, b2)
    return out[:, :, :W, :] if Wk != W else out


# ---------------------------------------------------------------------------
# Streamed L1 (mean absolute error) reduction
# ---------------------------------------------------------------------------
def _l1_sum_kernel(x_ref, y_ref, o_ref):
    @pl.when(pl.program_id(0) == 0)
    def _():
        o_ref[...] = jnp.zeros_like(o_ref)
    d = jnp.abs(x_ref[...].astype(jnp.float32) - y_ref[...].astype(jnp.float32))
    o_ref[...] = o_ref[...] + jnp.sum(d, keepdims=True)


def l1_loss(x, y):
    """torch.nn.functional.l1_loss(x, y) with reduction='mean'."""
    C = x.shape[-1]
    x2 = x.reshape(-1, C)
    y2 = y.reshape(-1, C)
    R = x2.shape[0]
    tr = _pick_rows(R, C)
    total = pl.pallas_call(
        _l1_sum_kernel,
        out_shape=jax.ShapeDtypeStruct((1, 1), jnp.float32),
        grid=(R // tr,),
        in_specs=[pl.BlockSpec((tr, C), lambda r: (r, 0)),
                  pl.BlockSpec((tr, C), lambda r: (r, 0))],
        out_specs=pl.BlockSpec((1, 1), lambda r: (0, 0)),
        compiler_params=pltpu.CompilerParams(
            dimension_semantics=("arbitrary",),
            vmem_limit_bytes=_VMEM_LIMIT),
    )(x2, y2)
    return total[0, 0] / x.size


# ---------------------------------------------------------------------------
# Gram matrix (style layers): streamed contraction over the pixel axis
# ---------------------------------------------------------------------------
def _gram_kernel(acl_ref, alc_ref, o_ref):
    @pl.when(pl.program_id(1) == 0)
    def _():
        o_ref[...] = jnp.zeros_like(o_ref)
    g = jnp.dot(acl_ref[0], alc_ref[0],               # (C,tl) @ (tl,C) -> (C,C)
                preferred_element_type=jnp.float32)
    o_ref[...] = o_ref[...] + g[None]


def gram_matrix(x_nhwc):
    """gram[n] = act @ act^T with act = (C, H*W) (PyTorch NCHW ordering)."""
    Nb, H, W, C = x_nhwc.shape
    L = H * W
    a_lc = x_nhwc.reshape(Nb, L, C)
    a_cl = jnp.transpose(a_lc, (0, 2, 1))             # cheap XLA transpose
    tl = _pick_gram_tile(L, C)
    return pl.pallas_call(
        _gram_kernel,
        out_shape=jax.ShapeDtypeStruct((Nb, C, C), jnp.float32),
        grid=(Nb, L // tl),
        in_specs=[pl.BlockSpec((1, C, tl), lambda n, l: (n, 0, l)),
                  pl.BlockSpec((1, tl, C), lambda n, l: (n, l, 0))],
        out_specs=pl.BlockSpec((1, C, C), lambda n, l: (n, 0, 0)),
        compiler_params=pltpu.CompilerParams(
            dimension_semantics=("parallel", "arbitrary"),
            vmem_limit_bytes=_VMEM_LIMIT),
    )(a_cl, a_lc)


# ---------------------------------------------------------------------------
# Plain-JAX glue
# ---------------------------------------------------------------------------
def maxpool2x2(x):
    """nn.MaxPool2d(kernel_size=2, stride=2) on NHWC."""
    N, H, W, C = x.shape
    return x.reshape(N, H // 2, 2, W // 2, 2, C).max(axis=(2, 4))


def bilinear_resize_nhwc(x, out_h, out_w):
    """F.interpolate(mode='bilinear', align_corners=False) semantics (NHWC)."""
    N, H, W, C = x.shape

    def coords(out_size, in_size):
        scale = in_size / out_size
        src = (jnp.arange(out_size, dtype=jnp.float32) + 0.5) * scale - 0.5
        src = jnp.clip(src, 0.0, in_size - 1)
        lo = jnp.floor(src).astype(jnp.int32)
        hi = jnp.minimum(lo + 1, in_size - 1)
        frac = src - lo.astype(jnp.float32)
        return lo, hi, frac

    y_lo, y_hi, y_f = coords(out_h, H)
    x_lo, x_hi, x_f = coords(out_w, W)

    def lerp_w(rows):
        left = rows[:, :, x_lo, :]
        right = rows[:, :, x_hi, :]
        wf = x_f[None, None, :, None]
        return left * (1.0 - wf) + right * wf

    top = lerp_w(x[:, y_lo, :, :])
    bot = lerp_w(x[:, y_hi, :, :])
    hf = y_f[None, :, None, None]
    return top * (1.0 - hf) + bot * hf


# ---------------------------------------------------------------------------
# VGGPerceptualLoss
# ---------------------------------------------------------------------------
class VGGPerceptualLossPallas:
    """Pallas re-implementation of VGGPerceptualLoss.forward.

    VGG16 features[:23] conv shapes; blocks mirror torchvision vgg16.features
    slices [:4], [4:9], [9:16], [16:23].  (The Sobel / SSIM members of the
    original module are constructed but never used in forward, so they are
    omitted here.)
    """

    _CONV_CFG = [(3, 64), (64, 64),                     # block 0
                 (64, 128), (128, 128),                 # block 1
                 (128, 256), (256, 256), (256, 256),    # block 2
                 (256, 512), (512, 512), (512, 512)]    # block 3
    _BLOCK_CONVS = [[0, 1], [2, 3], [4, 5, 6], [7, 8, 9]]

    def __init__(self, key, resize=True):
        self.resize = resize
        self.params = []
        for cin, cout in self._CONV_CFG:
            key, wk, bk = jax.random.split(key, 3)
            std = (2.0 / (cin * 9)) ** 0.5
            w = jax.random.normal(wk, (3, 3, cin, cout), jnp.float32) * std
            b = jax.random.normal(bk, (cout,), jnp.float32) * 0.01
            self.params.append((w, b))

    def _block(self, x, block_idx):
        if block_idx > 0:
            x = maxpool2x2(x)
        for ci in self._BLOCK_CONVS[block_idx]:
            w, b = self.params[ci]
            x = conv3x3(x, w, b, relu=True)
        return x

    def __call__(self, input_nchw, target_nchw,
                 feature_layers=(0, 1, 2, 3), style_layers=()):
        x, y = input_nchw, target_nchw
        if x.shape[1] != 3:
            # torch: input.repeat(1, 3, 1, 1) * 256.0
            x = jnp.tile(x, (1, 3, 1, 1)) * 256.0
            y = jnp.tile(y, (1, 3, 1, 1)) * 256.0
        # NCHW -> NHWC (kernel layout)
        x = jnp.transpose(x, (0, 2, 3, 1)).astype(jnp.float32)
        y = jnp.transpose(y, (0, 2, 3, 1)).astype(jnp.float32)
        if self.resize:
            x = bilinear_resize_nhwc(x, 224, 224)
            y = bilinear_resize_nhwc(y, 224, 224)

        N = x.shape[0]
        # Run input & target through the stack together: halves dispatches and
        # weight DMAs, doubles the grid length for better pipelining.
        z = jnp.concatenate([x, y], axis=0).astype(jnp.bfloat16)

        loss = jnp.float32(0.0)
        for i in range(4):
            z = self._block(z, i)
            if i in feature_layers:
                loss = loss + l1_loss(z[:N], z[N:])
            if i in style_layers:
                g = gram_matrix(z)
                loss = loss + l1_loss(g[:N], g[N:])
        return loss


# ---------------------------------------------------------------------------
# Demo + lightweight numeric self-checks
# ---------------------------------------------------------------------------
if __name__ == "__main__":
    import numpy as np

    key = jax.random.PRNGKey(0)
    k1, k2, k3, k4, k5, kp = jax.random.split(key, 6)

    # --- conv3x3 kernel vs. lax.conv reference (exercises Wk padding: W=12) --
    xc = jax.random.normal(k1, (2, 8, 12, 3), jnp.float32)
    wc = jax.random.normal(k2, (3, 3, 3, 16), jnp.float32) * 0.2
    bc = jax.random.normal(k3, (16,), jnp.float32) * 0.1
    out_k = conv3x3(xc, wc, bc, relu=True).astype(jnp.float32)
    xb = xc.astype(jnp.bfloat16).astype(jnp.float32)
    wb = wc.astype(jnp.bfloat16).astype(jnp.float32)
    ref = jax.lax.conv_general_dilated(
        xb, wb, window_strides=(1, 1), padding="SAME",
        dimension_numbers=("NHWC", "HWIO", "NHWC"))
    ref = jnp.maximum(ref + bc[None, None, None, :], 0.0)
    np.testing.assert_allclose(np.asarray(out_k), np.asarray(ref),
                               rtol=1e-1, atol=1e-1)

    # --- l1 / gram kernels vs. jnp references ------------------------------
    a = jax.random.normal(k4, (2, 8, 8, 64), jnp.bfloat16)
    bte = jax.random.normal(k5, (2, 8, 8, 64), jnp.bfloat16)
    l1_ref = jnp.mean(jnp.abs(a.astype(jnp.float32) - bte.astype(jnp.float32)))
    np.testing.assert_allclose(float(l1_loss(a, bte)), float(l1_ref),
                               rtol=1e-2, atol=1e-3)
    g_ref = jnp.einsum("nlc,nld->ncd",
                       a.reshape(2, 64, 64).astype(jnp.float32),
                       a.reshape(2, 64, 64).astype(jnp.float32))
    np.testing.assert_allclose(np.asarray(gram_matrix(a)), np.asarray(g_ref),
                               rtol=1e-2, atol=1e-1)

    # --- full VGGPerceptualLoss forward -------------------------------------
    # Small, module-consistent shapes: single-channel images (triggers the
    # repeat-to-3-channels * 256 path), batch=2, 32x32 spatial.
    N, C, H, W = 2, 1, 32, 32
    img_in = jax.random.uniform(k1, (N, C, H, W), jnp.float32)
    img_tgt = jax.random.uniform(k2, (N, C, H, W), jnp.float32)

    # resize=False keeps the demo shapes small; the resize=True (224x224)
    # path is supported by the same row-tiled / streamed kernels.
    model = VGGPerceptualLossPallas(kp, resize=False)

    loss = model(img_in, img_tgt)                       # default: feature layers
    loss_style = model(img_in, img_tgt,                 # exercises the Gram path
                       feature_layers=(0, 2), style_layers=(1, 3))
    loss, loss_style = jax.block_until_ready((loss, loss_style))
    assert bool(jnp.isfinite(loss)), "feature loss is not finite"
    assert bool(jnp.isfinite(loss_style)), "style loss is not finite"
    print("KERNEL_OK")
</pallas_src>

<mosaic_0001>
module attributes {stable_mosaic.version = 11 : i64} {
  func.func @_conv3x3_kernel(%arg0: i32, %arg1: i32, %arg2: memref<1x1x10x16x9xbf16, #tpu.memory_space<vmem>>, %arg3: memref<3x9x16xbf16, #tpu.memory_space<vmem>>, %arg4: memref<1x16xf32, #tpu.memory_space<vmem>>, %arg5: memref<1x8x16x16xbf16, #tpu.memory_space<vmem>>) attributes {dimension_semantics = [#tpu.dimension_semantics<parallel>, #tpu.dimension_semantics<parallel>], iteration_bounds = array<i64: 2, 1>, scalar_prefetch = 0 : i64, scratch_operands = 0 : i64, tpu.core_type = #tpu.core_type<tc>, window_params = [{transform_indices = @transform_0, window_bounds = array<i64: 1, 1, 10, 16, 9>}, {pipeline_mode = #tpu.pipeline_mode<synchronous>, transform_indices = @transform_1, window_bounds = array<i64: 3, 9, 16>}, {pipeline_mode = #tpu.pipeline_mode<synchronous>, transform_indices = @transform_2, window_bounds = array<i64: 1, 16>}, {transform_indices = @transform_3, window_bounds = array<i64: 1, 8, 16, 16>}]} {
    %c0 = arith.constant 0 : index
    %c0_0 = arith.constant 0 : index
    %c0_1 = arith.constant 0 : index
    %c0_2 = arith.constant 0 : index
    %c0_3 = arith.constant 0 : index
    %0 = vector.load %arg2[%c0, %c0_0, %c0_1, %c0_2, %c0_3] : memref<1x1x10x16x9xbf16, #tpu.memory_space<vmem>>, vector<1x1x10x16x9xbf16>
    %1 = vector.shape_cast %0 : vector<1x1x10x16x9xbf16> to vector<10x16x9xbf16>
    %2 = vector.extract_strided_slice %1 {offsets = [0, 0, 0], sizes = [8, 16, 9], strides = [1, 1, 1]} : vector<10x16x9xbf16> to vector<8x16x9xbf16>
    %3 = vector.shape_cast %2 : vector<8x16x9xbf16> to vector<128x9xbf16>
    %c0_4 = arith.constant 0 : index
    %c0_5 = arith.constant 0 : index
    %c0_6 = arith.constant 0 : index
    %4 = vector.load %arg3[%c0_4, %c0_5, %c0_6] : memref<3x9x16xbf16, #tpu.memory_space<vmem>>, vector<1x9x16xbf16>
    %5 = vector.shape_cast %4 : vector<1x9x16xbf16> to vector<9x16xbf16>
    %cst = arith.constant dense<0.000000e+00> : vector<128x16xf32>
    %6 = tpu.matmul %3, %5, %cst {dimension_numbers = #tpu.dot_dimension_numbers<[1], [0], [0], [1], [0, 0, 1, 1], [], []>} : vector<128x9xbf16>, vector<9x16xbf16>, vector<128x16xf32> -> vector<128x16xf32>
    %7 = vector.extract_strided_slice %1 {offsets = [1, 0, 0], sizes = [8, 16, 9], strides = [1, 1, 1]} : vector<10x16x9xbf16> to vector<8x16x9xbf16>
    %8 = vector.shape_cast %7 : vector<8x16x9xbf16> to vector<128x9xbf16>
    %c1 = arith.constant 1 : index
    %c0_7 = arith.constant 0 : index
    %c0_8 = arith.constant 0 : index
    %9 = vector.load %arg3[%c1, %c0_7, %c0_8] : memref<3x9x16xbf16, #tpu.memory_space<vmem>>, vector<1x9x16xbf16>
    %10 = vector.shape_cast %9 : vector<1x9x16xbf16> to vector<9x16xbf16>
    %cst_9 = arith.constant dense<0.000000e+00> : vector<128x16xf32>
    %11 = tpu.matmul %8, %10, %cst_9 {dimension_numbers = #tpu.dot_dimension_numbers<[1], [0], [0], [1], [0, 0, 1, 1], [], []>} : vector<128x9xbf16>, vector<9x16xbf16>, vector<128x16xf32> -> vector<128x16xf32>
    %12 = arith.addf %6, %11 : vector<128x16xf32>
    %13 = vector.extract_strided_slice %1 {offsets = [2, 0, 0], sizes = [8, 16, 9], strides = [1, 1, 1]} : vector<10x16x9xbf16> to vector<8x16x9xbf16>
    %14 = vector.shape_cast %13 : vector<8x16x9xbf16> to vector<128x9xbf16>
    %c2 = arith.constant 2 : index
    %c0_10 = arith.constant 0 : index
    %c0_11 = arith.constant 0 : index
    %15 = vector.load %arg3[%c2, %c0_10, %c0_11] : memref<3x9x16xbf16, #tpu.memory_space<vmem>>, vector<1x9x16xbf16>
    %16 = vector.shape_cast %15 : vector<1x9x16xbf16> to vector<9x16xbf16>
    %cst_12 = arith.constant dense<0.000000e+00> : vector<128x16xf32>
    %17 = tpu.matmul %14, %16, %cst_12 {dimension_numbers = #tpu.dot_dimension_numbers<[1], [0], [0], [1], [0, 0, 1, 1], [], []>} : vector<128x9xbf16>, vector<9x16xbf16>, vector<128x16xf32> -> vector<128x16xf32>
    %18 = arith.addf %12, %17 : vector<128x16xf32>
    %c0_13 = arith.constant 0 : index
    %c0_14 = arith.constant 0 : index
    %19 = vector.load %arg4[%c0_13, %c0_14] : memref<1x16xf32, #tpu.memory_space<vmem>>, vector<1x16xf32>
    %20 = vector.broadcast %19 : vector<1x16xf32> to vector<128x16xf32>
    %21 = arith.addf %18, %20 : vector<128x16xf32>
    %cst_15 = arith.constant 0.000000e+00 : f32
    %22 = vector.broadcast %cst_15 : f32 to vector<128x16xf32>
    %23 = arith.maximumf %21, %22 : vector<128x16xf32>
    %24 = vector.shape_cast %23 : vector<128x16xf32> to vector<8x16x16xf32>
    %25 = arith.truncf %24 : vector<8x16x16xf32> to vector<8x16x16xbf16>
    %c0_16 = arith.constant 0 : index
    %c0_17 = arith.constant 0 : index
    %c0_18 = arith.constant 0 : index
    %c0_19 = arith.constant 0 : index
    %26 = vector.load %arg5[%c0_16, %c0_17, %c0_18, %c0_19] : memref<1x8x16x16xbf16, #tpu.memory_space<vmem>>, vector<1x8x16x16xbf16>
    %27 = vector.shape_cast %26 : vector<1x8x16x16xbf16> to vector<8x16x16xbf16>
    %28 = vector.shape_cast %25 : vector<8x16x16xbf16> to vector<1x8x16x16xbf16>
    tpu.vector_store %arg5[%c0_16, %c0_17, %c0_18, %c0_19], %28 {strides = array<i32>} : memref<1x8x16x16xbf16, #tpu.memory_space<vmem>>, vector<1x8x16x16xbf16>,
    return
  }
  func.func @transform_0(%arg0: i32, %arg1: i32) -> (i32, i32, i32, i32, i32) {
    %c0_i32 = arith.constant 0 : i32
    %c0_i32_0 = arith.constant 0 : i32
    %c0_i32_1 = arith.constant 0 : i32
    %c0_i32_2 = arith.constant 0 : i32
    return %arg0, %arg1, %c0_i32, %c0_i32_0, %c0_i32_1 : i32, i32, i32, i32, i32
  }
  func.func @transform_1(%arg0: i32, %arg1: i32) -> (i32, i32, i32) {
    %c0_i32 = arith.constant 0 : i32
    %c0_i32_0 = arith.constant 0 : i32
    %c0_i32_1 = arith.constant 0 : i32
    %c0_i32_2 = arith.constant 0 : i32
    return %c0_i32, %c0_i32_0, %c0_i32_1 : i32, i32, i32
  }
  func.func @transform_2(%arg0: i32, %arg1: i32) -> (i32, i32) {
    %c0_i32 = arith.constant 0 : i32
    %c0_i32_0 = arith.constant 0 : i32
    %c0_i32_1 = arith.constant 0 : i32
    return %c0_i32, %c0_i32_0 : i32, i32
  }
  func.func @transform_3(%arg0: i32, %arg1: i32) -> (i32, i32, i32, i32) {
    %c0_i32 = arith.constant 0 : i32
    %c0_i32_0 = arith.constant 0 : i32
    %c0_i32_1 = arith.constant 0 : i32
    return %arg0, %arg1, %c0_i32, %c0_i32_0 : i32, i32, i32, i32
  }
}

</mosaic_0001>

<llo_original>
// kernel: tpu_custom_call.1
$region0: #{tpu_custom_call.1}
  #allocation0 [shape = 'u32[]', space=smem, size = 0x4, offset = 0x4, fixed_abs, tag = 'smem constant byte address 0x4 - core index']
  #allocation1 [shape = 'u32[144,128]{1,0:T(1,128)}', space=vmem, size = 0x12000, scoped, tag = 'internal scratch']
  %s0 = inlined_call_operand.vmem [shape: bf16[2,1,10,16,9], index: 0, kind: input, shape index: {}]
  %s1 = inlined_call_operand.vmem [shape: bf16[3,9,16], index: 1, kind: input, shape index: {}]
  %s2 = inlined_call_operand.vmem [shape: f32[1,16], index: 2, kind: input, shape index: {}]
  %s3 = inlined_call_operand.hbm [shape: bf16[2,8,16,16], index: 3, kind: output, shape index: {}]
  %s4 = sld [smem:[#allocation0]]
  $region45: #{tpu_custom_call.1} parent=0
    _
  %s6 = ssub.s32 1, %s4
  %s7 = scalar_select 0, %s6, %s4
  $region1: #{tpu_custom_call.1} parent=0
    #allocation2 [shape = 'u8[65536]{0}', space=vmem, size = 0x10000, scoped, tag = 'output window, operand 0']
    #allocation3 [shape = 's32[2]{0}', space=sflag, size = 0x8, scoped, tag = 'scoped memory for tpu_custom_call.1']
    %8 = vsyncpa [#allocation3], 0
    %s9 = scalar_lea.sflag [#allocation3], 1
    %10 = vsyncpa %s9, 0
    loop: start=0, step=1, limit=4
    $region2: #{tpu_custom_call.1} parent=1 // loop_pre_header
      _
    $region3: #{tpu_custom_call.1} parent=1 // loop_header
      %s12 = sphi 0, %s16
      %p13 = scmp.ge.s32.totalorder %s12, 4
      %s19 = sphi 0, %s31
      %s20 = sphi 0, %s27
      %s21 = sphi 0, %s19
      %s22 = sphi 0, %s20
      %s23 = sphi 0, %s21
      %s24 = sphi 0, %s22
      %s36 = sphi 0, %s38
      %s39 = sphi 0, %s36
      %s40 = sphi 0, %s39
      %s56 = sphi 0, %s40
      %s60 = sphi 0, %s60
      %s62 = sphi 0, %s60
      %s63 = sphi 0, %s62
      %s77 = sphi 0, %s63
      %s81 = sphi 0, %s81
      %s83 = sphi 0, %s81
      %s84 = sphi 0, %s83
      %s98 = sphi 0, %s84
      %s106 = sphi 0, %s108
      %s109 = sphi 0, %s106
      %s110 = sphi 0, %s109
      %s126 = sphi 0, %s110
    $region4: #{tpu_custom_call.1} parent=1 // loop_header_branch
      %15 = sbr.rel (%p13) target = $region8
    $region5: #{tpu_custom_call.1} parent=1 // loop_body
      %s17 = ssub.s32 %s12, 1
      %s18 = ssub.s32 %s12, 2
      %s25 = sadd.s32 1, %s20
      %p26 = scmp.ge.s32.totalorder %s25, 1
      %s27 = scalar_select %p26, 0, %s25
      %s28 = sadd.s32 1, %s19
      %s29 = scalar_select %p26, %s28, %s19
      %p30 = scmp.ge.s32.totalorder %s29, 2
      %s31 = scalar_select %p30, 0, %s29
      %s32 = ssub.s32 %s19, %s31
      %s33 = ssub.s32 %s20, %s27
      %s34 = sor.u32 %s32, %s33
      %p35 = scmp.eq.s32.totalorder %s34, 0
      %s37 = sadd.s32 %s36, 1
      %s38 = scalar_select %p35, %s36, %s37
      %p41 = pneg %p35
      %p42 = scmp.eq.s32.totalorder %s12, 1
      %p43 = por %p41, %p42
      %p44 = scmp.ne.s32.totalorder %s36, %s39
      %p45 = scmp.eq.s32.totalorder %s12, 0
      %p46 = por %p44, %p45
      %p47 = scmp.ne.s32.totalorder %s36, %s39
      %p48 = scmp.eq.s32.totalorder %s17, 1
      %p49 = por %p47, %p48
      %p50 = scmp.ne.s32.totalorder %s39, %s40
      %p51 = scmp.eq.s32.totalorder %s17, 0
      %p52 = por %p50, %p51
      %p53 = scmp.ne.s32.totalorder %s39, %s40
      %p54 = scmp.eq.s32.totalorder %s18, 1
      %p55 = por %p53, %p54
      %p57 = scmp.ne.s32.totalorder %s40, %s56
      %p58 = scmp.eq.s32.totalorder %s18, 0
      %p59 = por %p57, %p58
      %s61 = sadd.s32 %s60, 1
      %p64 = scmp.eq.s32.totalorder %s12, 1
      %p65 = scmp.ne.s32.totalorder %s60, %s62
      %p66 = scmp.eq.s32.totalorder %s12, 0
      %p67 = por %p65, %p66
      %p68 = scmp.ne.s32.totalorder %s60, %s62
      %p69 = scmp.eq.s32.totalorder %s17, 1
      %p70 = por %p68, %p69
      %p71 = scmp.ne.s32.totalorder %s62, %s63
      %p72 = scmp.eq.s32.totalorder %s17, 0
      %p73 = por %p71, %p72
      %p74 = scmp.ne.s32.totalorder %s62, %s63
      %p75 = scmp.eq.s32.totalorder %s18, 1
      %p76 = por %p74, %p75
      %p78 = scmp.ne.s32.totalorder %s63, %s77
      %p79 = scmp.eq.s32.totalorder %s18, 0
      %p80 = por %p78, %p79
      %s82 = sadd.s32 %s81, 1
      %p85 = scmp.eq.s32.totalorder %s12, 1
      %p86 = scmp.ne.s32.totalorder %s81, %s83
      %p87 = scmp.eq.s32.totalorder %s12, 0
      %p88 = por %p86, %p87
      %p89 = scmp.ne.s32.totalorder %s81, %s83
      %p90 = scmp.eq.s32.totalorder %s17, 1
      %p91 = por %p89, %p90
      %p92 = scmp.ne.s32.totalorder %s83, %s84
      %p93 = scmp.eq.s32.totalorder %s17, 0
      %p94 = por %p92, %p93
      %p95 = scmp.ne.s32.totalorder %s83, %s84
      %p96 = scmp.eq.s32.totalorder %s18, 1
      %p97 = por %p95, %p96
      %p99 = scmp.ne.s32.totalorder %s84, %s98
      %p100 = scmp.eq.s32.totalorder %s18, 0
      %p101 = por %p99, %p100
      %s102 = ssub.s32 %s19, %s31
      %s103 = ssub.s32 %s20, %s27
      %s104 = sor.u32 %s102, %s103
      %p105 = scmp.eq.s32.totalorder %s104, 0
      %s107 = sadd.s32 %s106, 1
      %s108 = scalar_select %p105, %s106, %s107
      %p111 = pneg %p105
      %p112 = scmp.eq.s32.totalorder %s12, 1
      %p113 = por %p111, %p112
      %p114 = scmp.ne.s32.totalorder %s106, %s109
      %p115 = scmp.eq.s32.totalorder %s12, 0
      %p116 = por %p114, %p115
      %p117 = scmp.ne.s32.totalorder %s106, %s109
      %p118 = scmp.eq.s32.totalorder %s17, 1
      %p119 = por %p117, %p118
      %p120 = scmp.ne.s32.totalorder %s109, %s110
      %p121 = scmp.eq.s32.totalorder %s17, 0
      %p122 = por %p120, %p121
      %p123 = scmp.ne.s32.totalorder %s109, %s110
      %p124 = scmp.eq.s32.totalorder %s18, 1
      %p125 = por %p123, %p124
      %p127 = scmp.ne.s32.totalorder %s110, %s126
      %p128 = scmp.eq.s32.totalorder %s18, 0
      %p129 = por %p127, %p128
      %p130 = scmp.le.s32.totalorder 1, %s12
      %p131 = scmp.lt.s32.totalorder %s12, 3
      %p132 = pnand %p130, %p131
      %p133 = pneg %p132
      // Predicated region
      $region9: #{tpu_custom_call.1} parent=5 // pred_check
        _
      $region10: #{tpu_custom_call.1} parent=5 // pred_check_branch
        %135 = sbr.rel (%p132) target = $region12
      $region11: #{tpu_custom_call.1} parent=5 // pred_region
        %s136 = ssub.s32 %s12, 1
        // Predicated region
        $region13: #{tpu_custom_call.1} parent=11 // pred_check
          %p137 = pneg %p73
        $region14: #{tpu_custom_call.1} parent=11 // pred_check_branch
          %139 = sbr.rel (%p137) target = $region16
        $region15: #{tpu_custom_call.1} parent=11 // pred_region
          _
        $region16: #{tpu_custom_call.1} parent=11 // pred_fallthru
          _
        // Predicated region
        $region17: #{tpu_custom_call.1} parent=11 // pred_check
          %p140 = pneg %p94
        $region18: #{tpu_custom_call.1} parent=11 // pred_check_branch
          %142 = sbr.rel (%p140) target = $region20
        $region19: #{tpu_custom_call.1} parent=11 // pred_region
          _
        $region20: #{tpu_custom_call.1} parent=11 // pred_fallthru
          _
      $region12: #{tpu_custom_call.1} parent=5 // pred_fallthru
        _
      %p143 = scmp.lt.s32.totalorder %s12, 2
      // Predicated region
      $region21: #{tpu_custom_call.1} parent=5 // pred_check
        %p144 = pneg %p143
      $region22: #{tpu_custom_call.1} parent=5 // pred_check_branch
        %146 = sbr.rel (%p144) target = $region24
      $region23: #{tpu_custom_call.1} parent=5 // pred_region
        // Predicated region
        $region25: #{tpu_custom_call.1} parent=23 // pred_check
          %p147 = pneg %p46
        $region26: #{tpu_custom_call.1} parent=23 // pred_check_branch
          %149 = sbr.rel (%p147) target = $region28
        $region27: #{tpu_custom_call.1} parent=23 // pred_region
          %p150 = scmp.lt.s32.totalorder %s19, 1
          %s151 = scalar_select %p150, %s19, 1
          %p152 = scmp.lt.s32.totalorder %s20, 0
          %s153 = scalar_select %p152, %s20, 0
          %s154 = smul.addr %s153, 20
          %s155 = smul.addr %s151, 20
          %s156 = sadd.s32 %s154, %s155
          %s157 = smul.addr %s156, 4
          %s158 = scalar_lea.vmem %s0, %s157
        $region28: #{tpu_custom_call.1} parent=23 // pred_fallthru
          _
      $region24: #{tpu_custom_call.1} parent=5 // pred_fallthru
        _
      %p159 = scmp.le.s32.totalorder 1, %s12
      %p160 = scmp.lt.s32.totalorder %s12, 3
      %p161 = pnand %p159, %p160
      %p162 = pneg %p161
      // Predicated region
      $region29: #{tpu_custom_call.1} parent=5 // pred_check
        _
      $region30: #{tpu_custom_call.1} parent=5 // pred_check_branch
        %164 = sbr.rel (%p161) target = $region32
      $region31: #{tpu_custom_call.1} parent=5 // pred_region
        %s165 = ssub.s32 %s12, 1
        %p166 = scmp.lt.s32.totalorder %s21, 1
        %s167 = scalar_select %p166, %s21, 1
        %p168 = scmp.lt.s32.totalorder %s22, 0
        %s169 = scalar_select %p168, %s22, 0
        %s170 = smul.addr %s169, 20
        %s171 = smul.addr %s167, 20
        %s172 = sadd.s32 %s170, %s171
        %s173 = smul.addr %s172, 4
        %s174 = scalar_lea.vmem %s0, %s173
        %p175 = pneg %p52
        %p176 = pneg %p49
        %p177 = pneg %p73
        %p178 = pneg %p70
        %p179 = pneg %p94
        %p180 = pneg %p91
        %p181 = pneg %p122
        %p182 = pneg %p119
        %s183 = sand.u32 %s109, 1
        %s184 = scalar_lea.sflag [#allocation3], %s183
        %s185 = sand.u32 %s109, 1
        %s186 = smul.addr %s185, 64
        %s187 = scalar_lea.vmem [#allocation2], %s186
        %p188 = scmp.lt.s32.totalorder %s21, 1
        %s189 = scalar_select %p188, %s21, 1
        %p190 = scmp.lt.s32.totalorder %s22, 0
        %s191 = scalar_select %p190, %s22, 0
        %s192 = smul.addr %s191, 20
        %s193 = smul.addr %s189, 20
        %s194 = sadd.s32 %s192, %s193
        %s195 = smul.addr %s194, 4
        %s196 = scalar_lea.vmem %s0, %s195
        %s197 = smul.u32 8, %s22
        %v199 = vld [vmem:[%s196] sm:$0xf]
        %v200 = vld [vmem:[%s196 + $0x4] sm:$0xf]
        %v201 = vld [vmem:[%s196 + $0x8] sm:$0xf]
        %v202 = vld [vmem:[%s196 + $0xc] sm:$0xf]
        %v203 = vld [vmem:[%s196 + $0x10] sm:$0xf]
        %v204 = vld [vmem:[%s196 + $0x14] sm:$0xf]
        %v205 = vld [vmem:[%s196 + $0x18] sm:$0xf]
        %v206 = vld [vmem:[%s196 + $0x1c] sm:$0xf]
        %v207 = vld [vmem:[%s196 + $0x20] sm:$0xf]
        %v208 = vld [vmem:[%s196 + $0x24] sm:$0xf]
        %v209 = vld [vmem:[%s196 + $0x28] sm:$0xf]
        %v210 = vld [vmem:[%s196 + $0x2c] sm:$0xf]
        %v211 = vld [vmem:[%s196 + $0x30] sm:$0xf]
        %v212 = vld [vmem:[%s196 + $0x34] sm:$0xf]
        %v213 = vld [vmem:[%s196 + $0x38] sm:$0xf]
        %v214 = vld [vmem:[%s196 + $0x3c] sm:$0xf]
        %v215 = vld [vmem:[%s196 + $0x40] sm:$0xf]
        %v216 = vld [vmem:[%s196 + $0x44] sm:$0xf]
        %v217 = vld [vmem:[%s196 + $0x48] sm:$0xf]
        %v218 = vld [vmem:[%s196 + $0x4c] sm:$0xf]
        %v219 = vld [vmem:[%s1] sm:$0xf]
        %v220 = vld [vmem:[%s1 + $0x4] sm:$0x1]
        %s221 = scalar_lea.vmem %s1, 8
        %v222 = vld [vmem:[%s221] sm:$0xf]
        %v223 = vld [vmem:[%s221 + $0x4] sm:$0x1]
        %v240 = vunpack.c.l.b16 %v201
        %v241 = vunpack.c.l.b16 %v202
        %v242 = vunpack.c.l.b16 %v203
        %v243 = vunpack.c.l.b16 %v204
        %v244 = vunpack.c.l.b16 %v205
        %v245 = vunpack.c.l.b16 %v206
        %v246 = vunpack.c.l.b16 %v207
        %v247 = vunpack.c.l.b16 %v208
        %v248 = vunpack.c.l.b16 %v209
        %v249 = vunpack.c.l.b16 %v210
        %v250 = vunpack.c.l.b16 %v211
        %v251 = vunpack.c.l.b16 %v212
        %v252 = vunpack.c.l.b16 %v213
        %v253 = vunpack.c.l.b16 %v214
        %v254 = vunpack.c.l.b16 %v215
        %v255 = vunpack.c.l.b16 %v216
        %v256 = vpack.c.b16 %v241, %v240
        %v257 = vpack.c.b16 %v243, %v242
        %v258 = vpack.c.b16 %v245, %v244
        %v259 = vpack.c.b16 %v247, %v246
        %v260 = vpack.c.b16 %v249, %v248
        %v261 = vpack.c.b16 %v251, %v250
        %v262 = vpack.c.b16 %v253, %v252
        %v263 = vpack.c.b16 %v255, %v254
        %v266 = vunpack.c.l.b16 %v222
        %v267 = vunpack.c.l.b16 %v223
        %v268 = vpack.c.b16 %v267, %v266
        %vm269 = vcmask 72704
        %v271 = vsel %vm269, %v256, 0
        %v274 = vsel %vm269, %v257, 0
        %v277 = vsel %vm269, %v258, 0
        %v280 = vsel %vm269, %v259, 0
        %v283 = vsel %vm269, %v260, 0
        %v286 = vsel %vm269, %v261, 0
        %v289 = vsel %vm269, %v262, 0
        %v292 = vsel %vm269, %v263, 0
        %vm294 = vcmask 1043456
        %vm295 = vcmask 1044480
        %v296 = vsel %vm294, 4294967295, 65535
        %v297 = vsel %vm295, %v296, 0
        %v299 = vand.u32 %v268, %v297
        %301 = vmatprep.subr.bf16.mxu0 0
        %302 = vmatpush1.bf16.msra.mxu0 0
        %303 = vmatprep.subr.bf16.mxu0 0
        %304 = vmatpush1.bf16.msra.mxu0 0
        %305 = vmatprep.subr.bf16.mxu0 0
        %306 = vmatpush1.bf16.msra.mxu0 0
        %307 = vmatprep.subr.bf16.mxu0 0
        %308 = vmatpush1.bf16.msra.mxu0 0
        %309 = vmatprep.subr.bf16.mxu0 0
        %310 = vmatpush1.bf16.msra.mxu0 0
        %311 = vmatprep.subr.bf16.mxu0 0
        %312 = vmatpush1.bf16.msra.mxu0 0
        %313 = vmatprep.subr.bf16.mxu0 0
        %314 = vmatpush1.bf16.msra.mxu0 0
        %315 = vmatprep.subr.bf16.mxu0 0
        %316 = vmatpush1.bf16.msra.mxu0 %v299
        %317 = vmatprep.subr.bf16.mxu0 0
        %318 = vmatpush2.bf16.msra.mxu0 0
        %319 = vmatprep.subr.bf16.mxu0 0
        %320 = vmatpush2.bf16.msra.mxu0 0
        %321 = vmatprep.subr.bf16.mxu0 0
        %322 = vmatpush2.bf16.msra.mxu0 0
        %323 = vmatprep.subr.bf16.mxu0 0
        %324 = vmatpush2.bf16.msra.mxu0 0
        %325 = vmatprep.subr.bf16.mxu0 0
        %326 = vmatpush2.bf16.msra.mxu0 0
        %327 = vmatprep.subr.bf16.mxu0 0
        %328 = vmatpush2.bf16.msra.mxu0 0
        %329 = vmatprep.subr.bf16.mxu0 0
        %330 = vmatpush2.bf16.msra.mxu0 0
        %331 = vmatprep.subr.bf16.mxu0 0
        %332 = vmatpush2.bf16.msra.mxu0 0
        %333 = vmatprep.mubr.bf16.mxu0 0
        %334 = vmatmul.mubr.bf16.gmra.mxu0 %v271
        %v335 = vpop.f32.mrf.mxu0
        %v336 = vadd.f32 0.0, %v335
        %v337 = vpop.f32.mrf.mxu0
        %v338 = vpop.f32.mrf.mxu0
        %v339 = vadd.f32 0.0, %v338
        %v340 = vpop.f32.mrf.mxu0
        %341 = vmatprep.mubr.bf16.mxu0 0
        %342 = vmatmul.mubr.bf16.gmra.mxu0 %v274
        %v343 = vpop.f32.mrf.mxu0
        %v344 = vadd.f32 0.0, %v343
        %v345 = vpop.f32.mrf.mxu0
        %v346 = vpop.f32.mrf.mxu0
        %v347 = vadd.f32 0.0, %v346
        %v348 = vpop.f32.mrf.mxu0
        %349 = vmatprep.mubr.bf16.mxu0 0
        %350 = vmatmul.mubr.bf16.gmra.mxu0 %v277
        %v351 = vpop.f32.mrf.mxu0
        %v352 = vadd.f32 0.0, %v351
        %v353 = vpop.f32.mrf.mxu0
        %v354 = vpop.f32.mrf.mxu0
        %v355 = vadd.f32 0.0, %v354
        %v356 = vpop.f32.mrf.mxu0
        %357 = vmatprep.mubr.bf16.mxu0 0
        %358 = vmatmul.mubr.bf16.gmra.mxu0 %v280
        %v359 = vpop.f32.mrf.mxu0
        %v360 = vadd.f32 0.0, %v359
        %v361 = vpop.f32.mrf.mxu0
        %v362 = vpop.f32.mrf.mxu0
        %v363 = vadd.f32 0.0, %v362
        %v364 = vpop.f32.mrf.mxu0
        %365 = vmatprep.mubr.bf16.mxu0 0
        %366 = vmatmul.mubr.bf16.gmra.mxu0 %v283
        %v367 = vpop.f32.mrf.mxu0
        %v368 = vadd.f32 0.0, %v367
        %v369 = vpop.f32.mrf.mxu0
        %v370 = vpop.f32.mrf.mxu0
        %v371 = vadd.f32 0.0, %v370
        %v372 = vpop.f32.mrf.mxu0
        %373 = vmatprep.mubr.bf16.mxu0 0
        %374 = vmatmul.mubr.bf16.gmra.mxu0 %v286
        %v375 = vpop.f32.mrf.mxu0
        %v376 = vadd.f32 0.0, %v375
        %v377 = vpop.f32.mrf.mxu0
        %v378 = vpop.f32.mrf.mxu0
        %v379 = vadd.f32 0.0, %v378
        %v380 = vpop.f32.mrf.mxu0
        %381 = vmatprep.mubr.bf16.mxu0 0
        %382 = vmatmul.mubr.bf16.gmra.mxu0 %v289
        %v383 = vpop.f32.mrf.mxu0
        %v384 = vadd.f32 0.0, %v383
        %v385 = vpop.f32.mrf.mxu0
        %v386 = vpop.f32.mrf.mxu0
        %v387 = vadd.f32 0.0, %v386
        %v388 = vpop.f32.mrf.mxu0
        %389 = vmatprep.mubr.bf16.mxu0 0
        %390 = vmatmul.mubr.bf16.gmra.mxu0 %v292
        %v391 = vpop.f32.mrf.mxu0
        %v392 = vadd.f32 0.0, %v391
        %v393 = vpop.f32.mrf.mxu0
        %v394 = vpop.f32.mrf.mxu0
        %v395 = vadd.f32 0.0, %v394
        %v396 = vpop.f32.mrf.mxu0
        %397 = vdwg.mxu0
        %v400 = vunpack.c.l.b16 %v199
        %v401 = vunpack.c.l.b16 %v200
        %v402 = vpack.c.b16 %v401, %v400
        %v405 = vunpack.c.l.b16 %v219
        %v406 = vunpack.c.l.b16 %v220
        %v407 = vpack.c.b16 %v406, %v405
        %v409 = vsel %vm269, %v402, 0
        %v412 = vand.u32 %v407, %v297
        %414 = vmatprep.subr.bf16.mxu0 0
        %415 = vmatpush1.bf16.msra.mxu0 0
        %416 = vmatprep.subr.bf16.mxu0 0
        %417 = vmatpush1.bf16.msra.mxu0 0
        %418 = vmatprep.subr.bf16.mxu0 0
        %419 = vmatpush1.bf16.msra.mxu0 0
        %420 = vmatprep.subr.bf16.mxu0 0
        %421 = vmatpush1.bf16.msra.mxu0 0
        %422 = vmatprep.subr.bf16.mxu0 0
        %423 = vmatpush1.bf16.msra.mxu0 0
        %424 = vmatprep.subr.bf16.mxu0 0
        %425 = vmatpush1.bf16.msra.mxu0 0
        %426 = vmatprep.subr.bf16.mxu0 0
        %427 = vmatpush1.bf16.msra.mxu0 0
        %428 = vmatprep.subr.bf16.mxu0 0
        %429 = vmatpush1.bf16.msra.mxu0 %v412
        %430 = vmatprep.subr.bf16.mxu0 0
        %431 = vmatpush2.bf16.msra.mxu0 0
        %432 = vmatprep.subr.bf16.mxu0 0
        %433 = vmatpush2.bf16.msra.mxu0 0
        %434 = vmatprep.subr.bf16.mxu0 0
        %435 = vmatpush2.bf16.msra.mxu0 0
        %436 = vmatprep.subr.bf16.mxu0 0
        %437 = vmatpush2.bf16.msra.mxu0 0
        %438 = vmatprep.subr.bf16.mxu0 0
        %439 = vmatpush2.bf16.msra.mxu0 0
        %440 = vmatprep.subr.bf16.mxu0 0
        %441 = vmatpush2.bf16.msra.mxu0 0
        %442 = vmatprep.subr.bf16.mxu0 0
        %443 = vmatpush2.bf16.msra.mxu0 0
        %444 = vmatprep.subr.bf16.mxu0 0
        %445 = vmatpush2.bf16.msra.mxu0 0
        %446 = vmatprep.mubr.bf16.mxu0 0
        %447 = vmatmul.mubr.bf16.gmra.mxu0 %v409
        %v448 = vpop.f32.mrf.mxu0
        %v449 = vadd.f32 %v336, %v448
        %v450 = vpop.f32.mrf.mxu0
        %v451 = vpop.f32.mrf.mxu0
        %v452 = vadd.f32 %v339, %v451
        %v453 = vpop.f32.mrf.mxu0
        %454 = vmatprep.mubr.bf16.mxu0 0
        %455 = vmatmul.mubr.bf16.gmra.mxu0 %v271
        %v456 = vpop.f32.mrf.mxu0
        %v457 = vadd.f32 %v344, %v456
        %v458 = vpop.f32.mrf.mxu0
        %v459 = vpop.f32.mrf.mxu0
        %v460 = vadd.f32 %v347, %v459
        %v461 = vpop.f32.mrf.mxu0
        %462 = vmatprep.mubr.bf16.mxu0 0
        %463 = vmatmul.mubr.bf16.gmra.mxu0 %v274
        %v464 = vpop.f32.mrf.mxu0
        %v465 = vadd.f32 %v352, %v464
        %v466 = vpop.f32.mrf.mxu0
        %v467 = vpop.f32.mrf.mxu0
        %v468 = vadd.f32 %v355, %v467
        %v469 = vpop.f32.mrf.mxu0
        %470 = vmatprep.mubr.bf16.mxu0 0
        %471 = vmatmul.mubr.bf16.gmra.mxu0 %v277
        %v472 = vpop.f32.mrf.mxu0
        %v473 = vadd.f32 %v360, %v472
        %v474 = vpop.f32.mrf.mxu0
        %v475 = vpop.f32.mrf.mxu0
        %v476 = vadd.f32 %v363, %v475
        %v477 = vpop.f32.mrf.mxu0
        %478 = vmatprep.mubr.bf16.mxu0 0
        %479 = vmatmul.mubr.bf16.gmra.mxu0 %v280
        %v480 = vpop.f32.mrf.mxu0
        %v481 = vadd.f32 %v368, %v480
        %v482 = vpop.f32.mrf.mxu0
        %v483 = vpop.f32.mrf.mxu0
        %v484 = vadd.f32 %v371, %v483
        %v485 = vpop.f32.mrf.mxu0
        %486 = vmatprep.mubr.bf16.mxu0 0
        %487 = vmatmul.mubr.bf16.gmra.mxu0 %v283
        %v488 = vpop.f32.mrf.mxu0
        %v489 = vadd.f32 %v376, %v488
        %v490 = vpop.f32.mrf.mxu0
        %v491 = vpop.f32.mrf.mxu0
        %v492 = vadd.f32 %v379, %v491
        %v493 = vpop.f32.mrf.mxu0
        %494 = vmatprep.mubr.bf16.mxu0 0
        %495 = vmatmul.mubr.bf16.gmra.mxu0 %v286
        %v496 = vpop.f32.mrf.mxu0
        %v497 = vadd.f32 %v384, %v496
        %v498 = vpop.f32.mrf.mxu0
        %v499 = vpop.f32.mrf.mxu0
        %v500 = vadd.f32 %v387, %v499
        %v501 = vpop.f32.mrf.mxu0
        %502 = vmatprep.mubr.bf16.mxu0 0
        %503 = vmatmul.mubr.bf16.gmra.mxu0 %v289
        %v504 = vpop.f32.mrf.mxu0
        %v505 = vadd.f32 %v392, %v504
        %v506 = vpop.f32.mrf.mxu0
        %v507 = vpop.f32.mrf.mxu0
        %v508 = vadd.f32 %v395, %v507
        %v509 = vpop.f32.mrf.mxu0
        %510 = vdwg.mxu0
        %s511 = scalar_lea.vmem %s1, 16
        %v512 = vld [vmem:[%s511] sm:$0xf]
        %v513 = vld [vmem:[%s511 + $0x4] sm:$0x1]
        %v516 = vunpack.c.l.b16 %v217
        %v517 = vunpack.c.l.b16 %v218
        %v518 = vpack.c.b16 %v517, %v516
        %v521 = vunpack.c.l.b16 %v512
        %v522 = vunpack.c.l.b16 %v513
        %v523 = vpack.c.b16 %v522, %v521
        %v525 = vsel %vm269, %v518, 0
        %v528 = vand.u32 %v523, %v297
        %530 = vmatprep.subr.bf16.mxu0 0
        %531 = vmatpush1.bf16.msra.mxu0 0
        %532 = vmatprep.subr.bf16.mxu0 0
        %533 = vmatpush1.bf16.msra.mxu0 0
        %534 = vmatprep.subr.bf16.mxu0 0
        %535 = vmatpush1.bf16.msra.mxu0 0
        %536 = vmatprep.subr.bf16.mxu0 0
        %537 = vmatpush1.bf16.msra.mxu0 0
        %538 = vmatprep.subr.bf16.mxu0 0
        %539 = vmatpush1.bf16.msra.mxu0 0
        %540 = vmatprep.subr.bf16.mxu0 0
        %541 = vmatpush1.bf16.msra.mxu0 0
        %542 = vmatprep.subr.bf16.mxu0 0
        %543 = vmatpush1.bf16.msra.mxu0 0
        %544 = vmatprep.subr.bf16.mxu0 0
        %545 = vmatpush1.bf16.msra.mxu0 %v528
        %546 = vmatprep.subr.bf16.mxu0 0
        %547 = vmatpush2.bf16.msra.mxu0 0
        %548 = vmatprep.subr.bf16.mxu0 0
        %549 = vmatpush2.bf16.msra.mxu0 0
        %550 = vmatprep.subr.bf16.mxu0 0
        %551 = vmatpush2.bf16.msra.mxu0 0
        %552 = vmatprep.subr.bf16.mxu0 0
        %553 = vmatpush2.bf16.msra.mxu0 0
        %554 = vmatprep.subr.bf16.mxu0 0
        %555 = vmatpush2.bf16.msra.mxu0 0
        %556 = vmatprep.subr.bf16.mxu0 0
        %557 = vmatpush2.bf16.msra.mxu0 0
        %558 = vmatprep.subr.bf16.mxu0 0
        %559 = vmatpush2.bf16.msra.mxu0 0
        %560 = vmatprep.subr.bf16.mxu0 0
        %561 = vmatpush2.bf16.msra.mxu0 0
        %562 = vmatprep.mubr.bf16.mxu0 0
        %563 = vmatmul.mubr.bf16.gmra.mxu0 %v274
        %v564 = vpop.f32.mrf.mxu0
        %v565 = vadd.f32 0.0, %v564
        %v566 = vpop.f32.mrf.mxu0
        %v567 = vpop.f32.mrf.mxu0
        %v568 = vadd.f32 0.0, %v567
        %v569 = vpop.f32.mrf.mxu0
        %570 = vmatprep.mubr.bf16.mxu0 0
        %571 = vmatmul.mubr.bf16.gmra.mxu0 %v277
        %v572 = vpop.f32.mrf.mxu0
        %v573 = vadd.f32 0.0, %v572
        %v574 = vpop.f32.mrf.mxu0
        %v575 = vpop.f32.mrf.mxu0
        %v576 = vadd.f32 0.0, %v575
        %v577 = vpop.f32.mrf.mxu0
        %578 = vmatprep.mubr.bf16.mxu0 0
        %579 = vmatmul.mubr.bf16.gmra.mxu0 %v280
        %v580 = vpop.f32.mrf.mxu0
        %v581 = vadd.f32 0.0, %v580
        %v582 = vpop.f32.mrf.mxu0
        %v583 = vpop.f32.mrf.mxu0
        %v584 = vadd.f32 0.0, %v583
        %v585 = vpop.f32.mrf.mxu0
        %586 = vmatprep.mubr.bf16.mxu0 0
        %587 = vmatmul.mubr.bf16.gmra.mxu0 %v283
        %v588 = vpop.f32.mrf.mxu0
        %v589 = vadd.f32 0.0, %v588
        %v590 = vpop.f32.mrf.mxu0
        %v591 = vpop.f32.mrf.mxu0
        %v592 = vadd.f32 0.0, %v591
        %v593 = vpop.f32.mrf.mxu0
        %594 = vmatprep.mubr.bf16.mxu0 0
        %595 = vmatmul.mubr.bf16.gmra.mxu0 %v286
        %v596 = vpop.f32.mrf.mxu0
        %v597 = vadd.f32 0.0, %v596
        %v598 = vpop.f32.mrf.mxu0
        %v599 = vpop.f32.mrf.mxu0
        %v600 = vadd.f32 0.0, %v599
        %v601 = vpop.f32.mrf.mxu0
        %602 = vmatprep.mubr.bf16.mxu0 0
        %603 = vmatmul.mubr.bf16.gmra.mxu0 %v289
        %v604 = vpop.f32.mrf.mxu0
        %v605 = vadd.f32 0.0, %v604
        %v606 = vpop.f32.mrf.mxu0
        %v607 = vpop.f32.mrf.mxu0
        %v608 = vadd.f32 0.0, %v607
        %v609 = vpop.f32.mrf.mxu0
        %610 = vmatprep.mubr.bf16.mxu0 0
        %611 = vmatmul.mubr.bf16.gmra.mxu0 %v292
        %v612 = vpop.f32.mrf.mxu0
        %v613 = vadd.f32 0.0, %v612
        %v614 = vpop.f32.mrf.mxu0
        %v615 = vpop.f32.mrf.mxu0
        %v616 = vadd.f32 0.0, %v615
        %v617 = vpop.f32.mrf.mxu0
        %618 = vmatprep.mubr.bf16.mxu0 0
        %619 = vmatmul.mubr.bf16.gmra.mxu0 %v525
        %v620 = vpop.f32.mrf.mxu0
        %v621 = vadd.f32 0.0, %v620
        %v622 = vpop.f32.mrf.mxu0
        %v623 = vpop.f32.mrf.mxu0
        %v624 = vadd.f32 0.0, %v623
        %v625 = vpop.f32.mrf.mxu0
        %626 = vdwg.mxu0
        %v627 = vadd.f32 %v449, %v565
        %v628 = vadd.f32 %v452, %v568
        %v629 = vadd.f32 %v457, %v573
        %v630 = vadd.f32 %v460, %v576
        %v631 = vadd.f32 %v465, %v581
        %v632 = vadd.f32 %v468, %v584
        %v633 = vadd.f32 %v473, %v589
        %v634 = vadd.f32 %v476, %v592
        %v635 = vadd.f32 %v481, %v597
        %v636 = vadd.f32 %v484, %v600
        %v637 = vadd.f32 %v489, %v605
        %v638 = vadd.f32 %v492, %v608
        %v639 = vadd.f32 %v497, %v613
        %v640 = vadd.f32 %v500, %v616
        %v641 = vadd.f32 %v505, %v621
        %v642 = vadd.f32 %v508, %v624
        %v643 = vld [vmem:[%s2] sm:$0x1]
        %v645 = vlaneseq
        %v646 = vshrl.u32 %v645, 7
        %v647 = vsub.s32 0, %v646
        %v648 = vrot.slane %v643, %v647
        %v650 = vadd.f32 %v627, %v648
        %v651 = vadd.f32 %v628, %v648
        %v652 = vadd.f32 %v629, %v648
        %v653 = vadd.f32 %v630, %v648
        %v654 = vadd.f32 %v631, %v648
        %v655 = vadd.f32 %v632, %v648
        %v656 = vadd.f32 %v633, %v648
        %v657 = vadd.f32 %v634, %v648
        %v658 = vadd.f32 %v635, %v648
        %v659 = vadd.f32 %v636, %v648
        %v660 = vadd.f32 %v637, %v648
        %v661 = vadd.f32 %v638, %v648
        %v662 = vadd.f32 %v639, %v648
        %v663 = vadd.f32 %v640, %v648
        %v664 = vadd.f32 %v641, %v648
        %v665 = vadd.f32 %v642, %v648
        %v666 = vmax.f32 %v650, 0.0
        %v667 = vmax.f32 %v651, 0.0
        %v668 = vmax.f32 %v652, 0.0
        %v669 = vmax.f32 %v653, 0.0
        %v670 = vmax.f32 %v654, 0.0
        %v671 = vmax.f32 %v655, 0.0
        %v672 = vmax.f32 %v656, 0.0
        %v673 = vmax.f32 %v657, 0.0
        %v674 = vmax.f32 %v658, 0.0
        %v675 = vmax.f32 %v659, 0.0
        %v676 = vmax.f32 %v660, 0.0
        %v677 = vmax.f32 %v661, 0.0
        %v678 = vmax.f32 %v662, 0.0
        %v679 = vmax.f32 %v663, 0.0
        %v680 = vmax.f32 %v664, 0.0
        %v681 = vmax.f32 %v665, 0.0
        %v682 = vpack.c.bf16 %v667, %v666
        %v683 = vpack.c.bf16 %v669, %v668
        %v684 = vpack.c.bf16 %v671, %v670
        %v685 = vpack.c.bf16 %v673, %v672
        %v686 = vpack.c.bf16 %v675, %v674
        %v687 = vpack.c.bf16 %v677, %v676
        %v688 = vpack.c.bf16 %v679, %v678
        %v689 = vpack.c.bf16 %v681, %v680
        %v698 = vunpack.c.l.b16 %v682
        %v699 = vunpack.c.h.b16 %v682
        %v700 = vunpack.c.l.b16 %v683
        %v701 = vunpack.c.h.b16 %v683
        %v702 = vunpack.c.l.b16 %v684
        %v703 = vunpack.c.h.b16 %v684
        %v704 = vunpack.c.l.b16 %v685
        %v705 = vunpack.c.h.b16 %v685
        %v706 = vunpack.c.l.b16 %v686
        %v707 = vunpack.c.h.b16 %v686
        %v708 = vunpack.c.l.b16 %v687
        %v709 = vunpack.c.h.b16 %v687
        %v710 = vunpack.c.l.b16 %v688
        %v711 = vunpack.c.h.b16 %v688
        %v712 = vunpack.c.l.b16 %v689
        %v713 = vunpack.c.h.b16 %v689
        %v714 = vpack.c.b16 %v698, %v698
        %v715 = vpack.c.b16 %v699, %v699
        %v716 = vpack.c.b16 %v700, %v700
        %v717 = vpack.c.b16 %v701, %v701
        %v718 = vpack.c.b16 %v702, %v702
        %v719 = vpack.c.b16 %v703, %v703
        %v720 = vpack.c.b16 %v704, %v704
        %v721 = vpack.c.b16 %v705, %v705
        %v722 = vpack.c.b16 %v706, %v706
        %v723 = vpack.c.b16 %v707, %v707
        %v724 = vpack.c.b16 %v708, %v708
        %v725 = vpack.c.b16 %v709, %v709
        %v726 = vpack.c.b16 %v710, %v710
        %v727 = vpack.c.b16 %v711, %v711
        %v728 = vpack.c.b16 %v712, %v712
        %v729 = vpack.c.b16 %v713, %v713
        %vm746 = vcmask 125952
        %747 = vst.msk [vmem:[%s187] sm:$0xf] %vm746, %v714
        %748 = vst.msk [vmem:[%s187 + $0x4] sm:$0xf] %vm746, %v715
        %749 = vst.msk [vmem:[%s187 + $0x8] sm:$0xf] %vm746, %v716
        %750 = vst.msk [vmem:[%s187 + $0xc] sm:$0xf] %vm746, %v717
        %751 = vst.msk [vmem:[%s187 + $0x10] sm:$0xf] %vm746, %v718
        %752 = vst.msk [vmem:[%s187 + $0x14] sm:$0xf] %vm746, %v719
        %753 = vst.msk [vmem:[%s187 + $0x18] sm:$0xf] %vm746, %v720
        %754 = vst.msk [vmem:[%s187 + $0x1c] sm:$0xf] %vm746, %v721
        %755 = vst.msk [vmem:[%s187 + $0x20] sm:$0xf] %vm746, %v722
        %756 = vst.msk [vmem:[%s187 + $0x24] sm:$0xf] %vm746, %v723
        %757 = vst.msk [vmem:[%s187 + $0x28] sm:$0xf] %vm746, %v724
        %758 = vst.msk [vmem:[%s187 + $0x2c] sm:$0xf] %vm746, %v725
        %759 = vst.msk [vmem:[%s187 + $0x30] sm:$0xf] %vm746, %v726
        %760 = vst.msk [vmem:[%s187 + $0x34] sm:$0xf] %vm746, %v727
        %761 = vst.msk [vmem:[%s187 + $0x38] sm:$0xf] %vm746, %v728
        %762 = vst.msk [vmem:[%s187 + $0x3c] sm:$0xf] %vm746, %v729
        %s763 = sand.u32 %s109, 1
        %s764 = scalar_lea.sflag [#allocation3], %s763
        %s765 = sand.u32 %s109, 1
        %s766 = smul.addr %s765, 64
        %s767 = scalar_lea.vmem [#allocation2], %s766
        // Predicated region
        $region33: #{tpu_custom_call.1} parent=31 // pred_check
          %p768 = pneg %p119
        $region34: #{tpu_custom_call.1} parent=31 // pred_check_branch
          %770 = sbr.rel (%p768) target = $region36
        $region35: #{tpu_custom_call.1} parent=31 // pred_region
          %s771 = smul.u32 8, %s22
          %s773 = ssub.s32 1024, 1024
          %774 = vsyncadd %s764, %s773
          %s775 = smul.addr %s771, 2
          %s776 = smul.addr %s21, 16
          %s777 = sadd.s32 %s775, %s776
          %s778 = smul.addr %s777, 64
          %s779 = scalar_lea.hbm %s3, %s778
          %s780 = sshll.u32 %s767, 4
          %s781 = int_to_ptr.vmem [resolvable:$true] %s780
          %786 = dma.vmem_to_hbm [thread:$0]  %s781, 1024, %s779, %s764, 64, 64, 4
        $region36: #{tpu_custom_call.1} parent=31 // pred_fallthru
          _
      $region32: #{tpu_custom_call.1} parent=5 // pred_fallthru
        _
      %p787 = scmp.le.s32.totalorder 2, %s12
      // Predicated region
      $region37: #{tpu_custom_call.1} parent=5 // pred_check
        %p788 = pneg %p787
      $region38: #{tpu_custom_call.1} parent=5 // pred_check_branch
        %790 = sbr.rel (%p788) target = $region40
      $region39: #{tpu_custom_call.1} parent=5 // pred_region
        %s791 = ssub.s32 %s12, 2
        // Predicated region
        $region41: #{tpu_custom_call.1} parent=39 // pred_check
          %p792 = pneg %p125
        $region42: #{tpu_custom_call.1} parent=39 // pred_check_branch
          %794 = sbr.rel (%p792) target = $region44
        $region43: #{tpu_custom_call.1} parent=39 // pred_region
          %s795 = sand.u32 %s110, 1
          %s796 = scalar_lea.sflag [#allocation3], %s795
          %s797 = sand.u32 %s110, 1
          %s798 = smul.addr %s797, 64
          %s799 = scalar_lea.vmem [#allocation2], %s798
          %800 = dma.done %s796, 1024
        $region44: #{tpu_custom_call.1} parent=39 // pred_fallthru
          _
      $region40: #{tpu_custom_call.1} parent=5 // pred_fallthru
        _
    $region6: #{tpu_custom_call.1} parent=1 // loop_footer
      %s16 = sadd.s32 1, %s12
    $region7: #{tpu_custom_call.1} parent=1 // loop_footer_branch
      %11 = sbr.rel target = $region3
    $region8: #{tpu_custom_call.1} parent=1 // loop_exit
      _
    %801 = vsyncpa [#allocation3], 1
    %s802 = scalar_lea.sflag [#allocation3], 1
    %803 = vsyncpa %s802, 1

</llo_original>
